<compile_context>
chip_gen: v7x
topology: tpu7x:2x2x1
jax: 0.10.0
libtpu: 0.0.40
codegen_flags: <defaults>
</compile_context>

<pallas_src>
import functools
import numpy as np
import jax
import jax.numpy as jnp
from jax import lax
from jax.experimental import pallas as pl
from jax.experimental.pallas import tpu as pltpu


# --------------------------- kernel construction helpers ---------------------

def _normalized_kernel(kernel, upsample_factor=1):
    """Replicates make_kernel(); returns (separable 1-D factor or None, 2-D kernel)."""
    k = np.asarray(kernel, np.float32)
    if k.ndim == 1:
        k2 = np.outer(k, k)
        k2 = k2 / k2.sum()
        k2 = k2 * (upsample_factor ** 2)
        k1 = (k / k.sum()) * float(upsample_factor)   # outer(k1, k1) == k2
        return k1, k2
    k2 = k / k.sum()
    k2 = k2 * (upsample_factor ** 2)
    return None, k2


def _round_up(n, m):
    return -(-n // m) * m


def _vmem_budgets():
    """Generation-aware (per-block budget bytes, vmem_limit_bytes)."""
    cap = 64 * 1024 * 1024
    try:
        cap = int(pltpu.get_tpu_info().vmem_capacity_bytes)
    except Exception:
        pass
    if cap >= 96 * 1024 * 1024:
        # v5e / v6e: 128 MiB physical VMEM -> big blocks, fewer grid steps.
        return 28 * 1024 * 1024, 96 * 1024 * 1024
    # v7x: 64 MiB physical VMEM -> leave headroom for compiler scratch.
    return 12 * 1024 * 1024, 48 * 1024 * 1024


# --------------------------- Pallas kernels: channels-last (H, W, C) ---------
# C (a multiple of 128) sits on the lane dim -> lane-dense VPU ops and stores.
# W is the sublane dim, H the leading dim.

def _blur_sep_cl_kernel(x_ref, o_ref, xp_ref, *, kh_taps, kw_taps, pad0, pad1):
    """Separable depthwise FIR, channels-last block (H, W, bc).

    Single staging of the zero-padded input; horizontal pass reads shifted
    sublane slices of the padded staging, vertical pass is pure register work
    (leading-axis slices of the intermediate) -- no second scratch round-trip.
    Borders are re-zeroed every grid step so the kernel stays correct under a
    "parallel" (megacore-sharded) grid.
    """
    H, W, bc = x_ref.shape
    Ho, Wo, _ = o_ref.shape
    Hp, Wp, _ = xp_ref.shape

    if pad0 > 0:
        xp_ref[0:pad0, :, :] = jnp.zeros((pad0, Wp, bc), jnp.float32)
        xp_ref[:, 0:pad0, :] = jnp.zeros((Hp, pad0, bc), jnp.float32)
    if pad1 > 0:
        xp_ref[Hp - pad1:Hp, :, :] = jnp.zeros((pad1, Wp, bc), jnp.float32)
        xp_ref[:, Wp - pad1:Wp, :] = jnp.zeros((Hp, pad1, bc), jnp.float32)
    xp_ref[pad0:pad0 + H, pad0:pad0 + W, :] = x_ref[...].astype(jnp.float32)

    # Horizontal pass over all Hp rows (the pad rows stay exactly zero), first
    # tap initializes the accumulator.
    j0, c0 = kw_taps[0]
    tmp = c0 * xp_ref[:, j0:j0 + Wo, :]
    for j, c in kw_taps[1:]:
        tmp = tmp + c * xp_ref[:, j:j + Wo, :]

    # Vertical pass: leading-axis slices of the register-resident intermediate.
    i0, c0 = kh_taps[0]
    acc = c0 * tmp[i0:i0 + Ho]
    for i, c in kh_taps[1:]:
        acc = acc + c * tmp[i:i + Ho]

    o_ref[...] = acc.astype(o_ref.dtype)


def _blur_2d_cl_kernel(x_ref, o_ref, xp_ref, *, taps, pad0, pad1):
    """General (non-separable) 2-D depthwise FIR, channels-last block."""
    H, W, bc = x_ref.shape
    Ho, Wo, _ = o_ref.shape
    Hp, Wp, _ = xp_ref.shape

    if pad0 > 0:
        xp_ref[0:pad0, :, :] = jnp.zeros((pad0, Wp, bc), jnp.float32)
        xp_ref[:, 0:pad0, :] = jnp.zeros((Hp, pad0, bc), jnp.float32)
    if pad1 > 0:
        xp_ref[Hp - pad1:Hp, :, :] = jnp.zeros((pad1, Wp, bc), jnp.float32)
        xp_ref[:, Wp - pad1:Wp, :] = jnp.zeros((Hp, pad1, bc), jnp.float32)
    xp_ref[pad0:pad0 + H, pad0:pad0 + W, :] = x_ref[...].astype(jnp.float32)

    i0, j0, c0 = taps[0]
    acc = c0 * xp_ref[i0:i0 + Ho, j0:j0 + Wo, :]
    for i, j, c in taps[1:]:
        acc = acc + c * xp_ref[i:i + Ho, j:j + Wo, :]
    o_ref[...] = acc.astype(o_ref.dtype)


# --------------------------- Pallas kernels: width-on-lane (NC, H, W) --------
# Fallback layout: used when W >= 128 (already lane-dense, HBM-bound -> the
# staging traffic hides behind the DMA pipeline) or N*C can't tile the lanes.

def _blur_sep_wl_kernel(x_ref, o_ref, xw_ref, th_ref, *, kh_taps, kw_taps, pad0, pad1):
    """Separable depthwise FIR, width-on-lane block (bc, H, W)."""
    bc, H, W = x_ref.shape
    _, Ho, Wo = o_ref.shape
    Wp = W + pad0 + pad1
    Hp = H + pad0 + pad1

    # W-padded staging.
    if pad0 > 0:
        xw_ref[:, :, 0:pad0] = jnp.zeros((bc, H, pad0), jnp.float32)
    if pad1 > 0:
        xw_ref[:, :, Wp - pad1:Wp] = jnp.zeros((bc, H, pad1), jnp.float32)
    xw_ref[:, :, pad0:pad0 + W] = x_ref[...].astype(jnp.float32)

    # Horizontal 1-D FIR (lane-dim shifts), first tap initializes.
    j0, c0 = kw_taps[0]
    tmp = c0 * xw_ref[:, :, j0:j0 + Wo]
    for j, c in kw_taps[1:]:
        tmp = tmp + c * xw_ref[:, :, j:j + Wo]

    # H-padded intermediate staging.
    if pad0 > 0:
        th_ref[:, 0:pad0, :] = jnp.zeros((bc, pad0, Wo), jnp.float32)
    if pad1 > 0:
        th_ref[:, Hp - pad1:Hp, :] = jnp.zeros((bc, pad1, Wo), jnp.float32)
    th_ref[:, pad0:pad0 + H, :] = tmp

    # Vertical 1-D FIR (sublane-dim shifts), first tap initializes.
    i0, c0 = kh_taps[0]
    acc = c0 * th_ref[:, i0:i0 + Ho, :]
    for i, c in kh_taps[1:]:
        acc = acc + c * th_ref[:, i:i + Ho, :]
    o_ref[...] = acc.astype(o_ref.dtype)


def _blur_2d_wl_kernel(x_ref, o_ref, xp_ref, *, taps, pad0, pad1):
    """General 2-D depthwise FIR, width-on-lane block (bc, H, W)."""
    bc, H, W = x_ref.shape
    _, Ho, Wo = o_ref.shape
    Hp = H + pad0 + pad1
    Wp = W + pad0 + pad1

    if pad0 > 0:
        xp_ref[:, 0:pad0, :] = jnp.zeros((bc, pad0, Wp), jnp.float32)
        xp_ref[:, :, 0:pad0] = jnp.zeros((bc, Hp, pad0), jnp.float32)
    if pad1 > 0:
        xp_ref[:, Hp - pad1:Hp, :] = jnp.zeros((bc, pad1, Wp), jnp.float32)
        xp_ref[:, :, Wp - pad1:Wp] = jnp.zeros((bc, Hp, pad1), jnp.float32)
    xp_ref[:, pad0:pad0 + H, pad0:pad0 + W] = x_ref[...].astype(jnp.float32)

    i0, j0, c0 = taps[0]
    acc = c0 * xp_ref[:, i0:i0 + Ho, j0:j0 + Wo]
    for i, j, c in taps[1:]:
        acc = acc + c * xp_ref[:, i:i + Ho, j:j + Wo]
    o_ref[...] = acc.astype(o_ref.dtype)


# --------------------------- public wrapper -----------------------------------

def blur(x_nchw, kernel=(1, 3, 3, 1), pad=(2, 1), upsample_factor=1):
    """Blur.forward: upfirdn2d(x, make_kernel(kernel) [* factor**2], pad=pad)."""
    pad0, pad1 = int(pad[0]), int(pad[1])
    # TODO(synk): negative upfirdn2d pads (cropping) are not implemented.
    assert pad0 >= 0 and pad1 >= 0, "negative pads unsupported"

    k1, k2 = _normalized_kernel(kernel, upsample_factor)
    kh, kw = k2.shape
    N, C, H, W = x_nchw.shape
    Hp, Wp = H + pad0 + pad1, W + pad0 + pad1
    Ho, Wo = Hp - kh + 1, Wp - kw + 1
    assert Ho > 0 and Wo > 0
    NC = N * C

    budget, vmem_limit = _vmem_budgets()
    r8 = lambda n: _round_up(n, 8)
    r128 = lambda n: _round_up(n, 128)

    # Layout choice: channels on the lane dim when W is lane-sparse and N*C can
    # tile the 128 lanes; otherwise keep W on the lane dim.
    # TODO(synk): when W < 128 and N*C is not a multiple of 128, padding the
    # channel axis up to a lane multiple would recover lane density too.
    channels_last = (W < 128) and (NC % 128 == 0)

    if channels_last:
        # Per-channel f32 VMEM footprint (lane dim is the dense channel block,
        # sublane dims round to 8): double-buffered in/out + padded staging +
        # an allowance for the register-resident intermediate/accumulator.
        per_c = 4 * (2 * H * r8(W) + 2 * Ho * r8(Wo)
                     + Hp * r8(Wp) + Hp * r8(Wo) + Ho * r8(Wo))
        limit = min(max(budget // per_c, 128), max(NC // 4, 128))
        bc, d = 128, 256
        while d <= min(limit, NC):
            if NC % d == 0:
                bc = d
            d += 128
        grid = (NC // bc,)

        x_in = jnp.transpose(x_nchw.reshape(NC, H, W), (1, 2, 0))     # (H, W, NC)
        in_specs = [pl.BlockSpec((H, W, bc), lambda i: (0, 0, i))]
        out_specs = pl.BlockSpec((Ho, Wo, bc), lambda i: (0, 0, i))
        out_struct = jax.ShapeDtypeStruct((Ho, Wo, NC), x_nchw.dtype)
        scratch = [pltpu.VMEM((Hp, Wp, bc), jnp.float32)]

        if k1 is not None:
            k1f = np.flip(k1)   # upfirdn2d convolves with the flipped kernel
            kw_taps = tuple((j, float(k1f[j])) for j in range(kw) if float(k1f[j]) != 0.0)
            kh_taps = tuple((i, float(k1f[i])) for i in range(kh) if float(k1f[i]) != 0.0)
            kern = functools.partial(_blur_sep_cl_kernel, kh_taps=kh_taps,
                                     kw_taps=kw_taps, pad0=pad0, pad1=pad1)
        else:
            k2f = np.flip(k2)
            taps = tuple((i, j, float(k2f[i, j]))
                         for i in range(kh) for j in range(kw)
                         if float(k2f[i, j]) != 0.0)
            kern = functools.partial(_blur_2d_cl_kernel, taps=taps, pad0=pad0, pad1=pad1)
    else:
        # Layout-aware footprint: lane dims round to 128, sublane dims to 8.
        per_c = 4 * (2 * r8(H) * r128(W) + 2 * r8(Ho) * r128(Wo)
                     + r8(H) * r128(Wp) + 2 * r8(Hp) * r128(Wo))
        limit = min(max(budget // per_c, 1), max(NC // 4, 1))
        bc = 1
        for d in range(1, NC + 1):
            if NC % d == 0 and d <= limit:
                bc = d
        grid = (NC // bc,)

        x_in = x_nchw.reshape(NC, H, W)                                # free reshape
        in_specs = [pl.BlockSpec((bc, H, W), lambda i: (i, 0, 0))]
        out_specs = pl.BlockSpec((bc, Ho, Wo), lambda i: (i, 0, 0))
        out_struct = jax.ShapeDtypeStruct((NC, Ho, Wo), x_nchw.dtype)

        if k1 is not None:
            k1f = np.flip(k1)
            kw_taps = tuple((j, float(k1f[j])) for j in range(kw) if float(k1f[j]) != 0.0)
            kh_taps = tuple((i, float(k1f[i])) for i in range(kh) if float(k1f[i]) != 0.0)
            kern = functools.partial(_blur_sep_wl_kernel, kh_taps=kh_taps,
                                     kw_taps=kw_taps, pad0=pad0, pad1=pad1)
            scratch = [pltpu.VMEM((bc, H, Wp), jnp.float32),
                       pltpu.VMEM((bc, Hp, Wo), jnp.float32)]
        else:
            k2f = np.flip(k2)
            taps = tuple((i, j, float(k2f[i, j]))
                         for i in range(kh) for j in range(kw)
                         if float(k2f[i, j]) != 0.0)
            kern = functools.partial(_blur_2d_wl_kernel, taps=taps, pad0=pad0, pad1=pad1)
            scratch = [pltpu.VMEM((bc, Hp, Wp), jnp.float32)]

    # Make "a single block does not fit" visible instead of a cryptic compile
    # failure.  TODO(synk): tile over H with a (kh-1) halo for gigantic planes.
    assert per_c * bc <= vmem_limit, (
        f"Blur block footprint ~{per_c * bc} B exceeds the VMEM limit "
        f"{vmem_limit} B; H-tiling with halos is not implemented.")

    out = pl.pallas_call(
        kern,
        out_shape=out_struct,
        grid_spec=pltpu.PrefetchScalarGridSpec(
            num_scalar_prefetch=0,
            grid=grid,
            in_specs=in_specs,
            out_specs=out_specs,
            scratch_shapes=scratch),
        compiler_params=pltpu.CompilerParams(
            dimension_semantics=("parallel",),
            vmem_limit_bytes=vmem_limit),
    )(x_in)

    if channels_last:
        return jnp.transpose(out, (2, 0, 1)).reshape(N, C, Ho, Wo)
    return out.reshape(N, C, Ho, Wo)


# --------------------------- pure-JAX reference -------------------------------

def blur_reference(x_nchw, kernel=(1, 3, 3, 1), pad=(2, 1), upsample_factor=1):
    _, k2 = _normalized_kernel(kernel, upsample_factor)
    C = x_nchw.shape[1]
    pad0, pad1 = pad
    xp = jnp.pad(x_nchw, ((0, 0), (0, 0), (pad0, pad1), (pad0, pad1)))
    w = jnp.asarray(np.flip(k2).copy())[None, None].astype(x_nchw.dtype)
    w = jnp.tile(w, (C, 1, 1, 1))
    return lax.conv_general_dilated(
        xp, w, window_strides=(1, 1), padding="VALID",
        dimension_numbers=("NCHW", "OIHW", "NCHW"), feature_group_count=C)


# --------------------------- main ----------------------------------------------

if __name__ == "__main__":
    key = jax.random.PRNGKey(0)
    x = jax.random.normal(key, (2, 4, 16, 16), jnp.float32)
    k2d = np.array([[1., 2., 1.], [2., 4., 2.], [1., 2., 1.]], np.float32)

    # 1) standard StyleGAN2 usage: separable [1,3,3,1], pad=(2,1)  (width-on-lane path)
    out = jax.block_until_ready(blur(x, kernel=(1, 3, 3, 1), pad=(2, 1)))
    ref = jax.block_until_ready(blur_reference(x, kernel=(1, 3, 3, 1), pad=(2, 1)))
    assert out.shape == ref.shape == (2, 4, 16, 16), out.shape
    err = float(jnp.max(jnp.abs(out - ref)))
    assert jnp.allclose(out, ref, atol=1e-4, rtol=1e-4), f"max abs err {err}"

    # 2) upsample-scaled kernel (Blur(..., upsample_factor=2)), pad=(2,2)
    out2 = jax.block_until_ready(blur(x, kernel=(1, 3, 3, 1), pad=(2, 2), upsample_factor=2))
    ref2 = jax.block_until_ready(blur_reference(x, kernel=(1, 3, 3, 1), pad=(2, 2), upsample_factor=2))
    err2 = float(jnp.max(jnp.abs(out2 - ref2)))
    assert out2.shape == (2, 4, 17, 17), out2.shape
    assert jnp.allclose(out2, ref2, atol=1e-4, rtol=1e-4), f"max abs err {err2}"

    # 3) explicit 2-D (non-separable path) kernel, width-on-lane layout
    out3 = jax.block_until_ready(blur(x, kernel=k2d, pad=(1, 1)))
    ref3 = jax.block_until_ready(blur_reference(x, kernel=k2d, pad=(1, 1)))
    err3 = float(jnp.max(jnp.abs(out3 - ref3)))
    assert jnp.allclose(out3, ref3, atol=1e-4, rtol=1e-4), f"max abs err {err3}"

    # 4) channels-last path (N*C multiple of 128): lane-dense separable kernel
    xcl = jax.random.normal(jax.random.PRNGKey(1), (2, 64, 16, 16), jnp.float32)
    out4 = jax.block_until_ready(blur(xcl, kernel=(1, 3, 3, 1), pad=(2, 1)))
    ref4 = jax.block_until_ready(blur_reference(xcl, kernel=(1, 3, 3, 1), pad=(2, 1)))
    err4 = float(jnp.max(jnp.abs(out4 - ref4)))
    assert out4.shape == (2, 64, 16, 16), out4.shape
    assert jnp.allclose(out4, ref4, atol=1e-4, rtol=1e-4), f"max abs err {err4}"

    # 5) channels-last path, non-separable 2-D kernel
    out5 = jax.block_until_ready(blur(xcl, kernel=k2d, pad=(1, 1)))
    ref5 = jax.block_until_ready(blur_reference(xcl, kernel=k2d, pad=(1, 1)))
    err5 = float(jnp.max(jnp.abs(out5 - ref5)))
    assert jnp.allclose(out5, ref5, atol=1e-4, rtol=1e-4), f"max abs err {err5}"

    print("KERNEL_OK")
</pallas_src>

<mosaic_0001>
module attributes {stable_mosaic.version = 11 : i64} {
  func.func @_blur_sep_wl_kernel(%arg0: i32, %arg1: memref<2x16x16xf32, #tpu.memory_space<vmem>>, %arg2: memref<2x16x16xf32, #tpu.memory_space<vmem>>, %arg3: memref<2x16x19xf32, #tpu.memory_space<vmem>>, %arg4: memref<2x19x16xf32, #tpu.memory_space<vmem>>) attributes {dimension_semantics = [#tpu.dimension_semantics<parallel>], iteration_bounds = array<i64: 4>, scalar_prefetch = 0 : i64, scratch_operands = 2 : i64, tpu.core_type = #tpu.core_type<tc>, window_params = [{transform_indices = @transform_0, window_bounds = array<i64: 2, 16, 16>}, {transform_indices = @transform_1, window_bounds = array<i64: 2, 16, 16>}]} {
    %cst = arith.constant 0.000000e+00 : f32
    %0 = vector.broadcast %cst : f32 to vector<2x16x2xf32>
    %c0 = arith.constant 0 : index
    %c0_0 = arith.constant 0 : index
    %c0_1 = arith.constant 0 : index
    %1 = vector.load %arg3[%c0, %c0_0, %c0_1] : memref<2x16x19xf32, #tpu.memory_space<vmem>>, vector<2x16x2xf32>
    tpu.vector_store %arg3[%c0, %c0_0, %c0_1], %0 {strides = array<i32>} : memref<2x16x19xf32, #tpu.memory_space<vmem>>, vector<2x16x2xf32>,
    %cst_2 = arith.constant 0.000000e+00 : f32
    %2 = vector.broadcast %cst_2 : f32 to vector<2x16x1xf32>
    %c0_3 = arith.constant 0 : index
    %c0_4 = arith.constant 0 : index
    %c18 = arith.constant 18 : index
    %3 = vector.load %arg3[%c0_3, %c0_4, %c18] : memref<2x16x19xf32, #tpu.memory_space<vmem>>, vector<2x16x1xf32>
    tpu.vector_store %arg3[%c0_3, %c0_4, %c18], %2 {strides = array<i32>} : memref<2x16x19xf32, #tpu.memory_space<vmem>>, vector<2x16x1xf32>,
    %c0_5 = arith.constant 0 : index
    %c0_6 = arith.constant 0 : index
    %c0_7 = arith.constant 0 : index
    %4 = vector.load %arg1[%c0_5, %c0_6, %c0_7] : memref<2x16x16xf32, #tpu.memory_space<vmem>>, vector<2x16x16xf32>
    %c0_8 = arith.constant 0 : index
    %c0_9 = arith.constant 0 : index
    %c2 = arith.constant 2 : index
    %5 = vector.load %arg3[%c0_8, %c0_9, %c2] : memref<2x16x19xf32, #tpu.memory_space<vmem>>, vector<2x16x16xf32>
    tpu.vector_store %arg3[%c0_8, %c0_9, %c2], %4 {strides = array<i32>} : memref<2x16x19xf32, #tpu.memory_space<vmem>>, vector<2x16x16xf32>,
    %c0_10 = arith.constant 0 : index
    %c0_11 = arith.constant 0 : index
    %c0_12 = arith.constant 0 : index
    %6 = vector.load %arg3[%c0_10, %c0_11, %c0_12] : memref<2x16x19xf32, #tpu.memory_space<vmem>>, vector<2x16x16xf32>
    %cst_13 = arith.constant 1.250000e-01 : f32
    %7 = vector.broadcast %cst_13 : f32 to vector<2x16x16xf32>
    %8 = arith.mulf %7, %6 : vector<2x16x16xf32>
    %c0_14 = arith.constant 0 : index
    %c0_15 = arith.constant 0 : index
    %c1 = arith.constant 1 : index
    %9 = vector.load %arg3[%c0_14, %c0_15, %c1] : memref<2x16x19xf32, #tpu.memory_space<vmem>>, vector<2x16x16xf32>
    %cst_16 = arith.constant 3.750000e-01 : f32
    %10 = vector.broadcast %cst_16 : f32 to vector<2x16x16xf32>
    %11 = arith.mulf %10, %9 : vector<2x16x16xf32>
    %12 = arith.addf %8, %11 : vector<2x16x16xf32>
    %c0_17 = arith.constant 0 : index
    %c0_18 = arith.constant 0 : index
    %c2_19 = arith.constant 2 : index
    %13 = vector.load %arg3[%c0_17, %c0_18, %c2_19] : memref<2x16x19xf32, #tpu.memory_space<vmem>>, vector<2x16x16xf32>
    %cst_20 = arith.constant 3.750000e-01 : f32
    %14 = vector.broadcast %cst_20 : f32 to vector<2x16x16xf32>
    %15 = arith.mulf %14, %13 : vector<2x16x16xf32>
    %16 = arith.addf %12, %15 : vector<2x16x16xf32>
    %c0_21 = arith.constant 0 : index
    %c0_22 = arith.constant 0 : index
    %c3 = arith.constant 3 : index
    %17 = vector.load %arg3[%c0_21, %c0_22, %c3] : memref<2x16x19xf32, #tpu.memory_space<vmem>>, vector<2x16x16xf32>
    %cst_23 = arith.constant 1.250000e-01 : f32
    %18 = vector.broadcast %cst_23 : f32 to vector<2x16x16xf32>
    %19 = arith.mulf %18, %17 : vector<2x16x16xf32>
    %20 = arith.addf %16, %19 : vector<2x16x16xf32>
    %cst_24 = arith.constant 0.000000e+00 : f32
    %21 = vector.broadcast %cst_24 : f32 to vector<2x2x16xf32>
    %c0_25 = arith.constant 0 : index
    %c0_26 = arith.constant 0 : index
    %c0_27 = arith.constant 0 : index
    %22 = vector.load %arg4[%c0_25, %c0_26, %c0_27] : memref<2x19x16xf32, #tpu.memory_space<vmem>>, vector<2x2x16xf32>
    tpu.vector_store %arg4[%c0_25, %c0_26, %c0_27], %21 {strides = array<i32>} : memref<2x19x16xf32, #tpu.memory_space<vmem>>, vector<2x2x16xf32>,
    %cst_28 = arith.constant 0.000000e+00 : f32
    %23 = vector.broadcast %cst_28 : f32 to vector<2x1x16xf32>
    %c0_29 = arith.constant 0 : index
    %c18_30 = arith.constant 18 : index
    %c0_31 = arith.constant 0 : index
    %24 = vector.load %arg4[%c0_29, %c18_30, %c0_31] : memref<2x19x16xf32, #tpu.memory_space<vmem>>, vector<2x1x16xf32>
    tpu.vector_store %arg4[%c0_29, %c18_30, %c0_31], %23 {strides = array<i32>} : memref<2x19x16xf32, #tpu.memory_space<vmem>>, vector<2x1x16xf32>,
    %c0_32 = arith.constant 0 : index
    %c2_33 = arith.constant 2 : index
    %c0_34 = arith.constant 0 : index
    %25 = vector.load %arg4[%c0_32, %c2_33, %c0_34] : memref<2x19x16xf32, #tpu.memory_space<vmem>>, vector<2x16x16xf32>
    tpu.vector_store %arg4[%c0_32, %c2_33, %c0_34], %20 {strides = array<i32>} : memref<2x19x16xf32, #tpu.memory_space<vmem>>, vector<2x16x16xf32>,
    %c0_35 = arith.constant 0 : index
    %c0_36 = arith.constant 0 : index
    %c0_37 = arith.constant 0 : index
    %26 = vector.load %arg4[%c0_35, %c0_36, %c0_37] : memref<2x19x16xf32, #tpu.memory_space<vmem>>, vector<2x16x16xf32>
    %cst_38 = arith.constant 1.250000e-01 : f32
    %27 = vector.broadcast %cst_38 : f32 to vector<2x16x16xf32>
    %28 = arith.mulf %27, %26 : vector<2x16x16xf32>
    %c0_39 = arith.constant 0 : index
    %c1_40 = arith.constant 1 : index
    %c0_41 = arith.constant 0 : index
    %29 = vector.load %arg4[%c0_39, %c1_40, %c0_41] : memref<2x19x16xf32, #tpu.memory_space<vmem>>, vector<2x16x16xf32>
    %cst_42 = arith.constant 3.750000e-01 : f32
    %30 = vector.broadcast %cst_42 : f32 to vector<2x16x16xf32>
    %31 = arith.mulf %30, %29 : vector<2x16x16xf32>
    %32 = arith.addf %28, %31 : vector<2x16x16xf32>
    %c0_43 = arith.constant 0 : index
    %c2_44 = arith.constant 2 : index
    %c0_45 = arith.constant 0 : index
    %33 = vector.load %arg4[%c0_43, %c2_44, %c0_45] : memref<2x19x16xf32, #tpu.memory_space<vmem>>, vector<2x16x16xf32>
    %cst_46 = arith.constant 3.750000e-01 : f32
    %34 = vector.broadcast %cst_46 : f32 to vector<2x16x16xf32>
    %35 = arith.mulf %34, %33 : vector<2x16x16xf32>
    %36 = arith.addf %32, %35 : vector<2x16x16xf32>
    %c0_47 = arith.constant 0 : index
    %c3_48 = arith.constant 3 : index
    %c0_49 = arith.constant 0 : index
    %37 = vector.load %arg4[%c0_47, %c3_48, %c0_49] : memref<2x19x16xf32, #tpu.memory_space<vmem>>, vector<2x16x16xf32>
    %cst_50 = arith.constant 1.250000e-01 : f32
    %38 = vector.broadcast %cst_50 : f32 to vector<2x16x16xf32>
    %39 = arith.mulf %38, %37 : vector<2x16x16xf32>
    %40 = arith.addf %36, %39 : vector<2x16x16xf32>
    %c0_51 = arith.constant 0 : index
    %c0_52 = arith.constant 0 : index
    %c0_53 = arith.constant 0 : index
    %41 = vector.load %arg2[%c0_51, %c0_52, %c0_53] : memref<2x16x16xf32, #tpu.memory_space<vmem>>, vector<2x16x16xf32>
    tpu.vector_store %arg2[%c0_51, %c0_52, %c0_53], %40 {strides = array<i32>} : memref<2x16x16xf32, #tpu.memory_space<vmem>>, vector<2x16x16xf32>,
    return
  }
  func.func @transform_0(%arg0: i32) -> (i32, i32, i32) {
    %c0_i32 = arith.constant 0 : i32
    %c0_i32_0 = arith.constant 0 : i32
    %c0_i32_1 = arith.constant 0 : i32
    return %arg0, %c0_i32, %c0_i32_0 : i32, i32, i32
  }
  func.func @transform_1(%arg0: i32) -> (i32, i32, i32) {
    %c0_i32 = arith.constant 0 : i32
    %c0_i32_0 = arith.constant 0 : i32
    %c0_i32_1 = arith.constant 0 : i32
    return %arg0, %c0_i32, %c0_i32_0 : i32, i32, i32
  }
}

</mosaic_0001>

<llo_original>
// kernel: tpu_custom_call.1
$region0: #{tpu_custom_call.1}
  #allocation0 [shape = 'u32[]', space=smem, size = 0x4, offset = 0x4, fixed_abs, tag = 'smem constant byte address 0x4 - core index']
  #allocation1 [shape = 'u32[144,128]{1,0:T(1,128)}', space=vmem, size = 0x12000, scoped, tag = 'internal scratch']
  #allocation2 [shape = 'f32[2,16,19]{2,1,0:T(8,128)}', space=vmem, size = 0x4000, scoped, tag = 'scratch operand']
  #allocation3 [shape = 'f32[2,19,16]{2,1,0:T(8,128)}', space=vmem, size = 0x6000, scoped, tag = 'scratch operand']
  %s0 = inlined_call_operand.hbm [shape: f32[8,16,16], index: 0, kind: input, shape index: {}]
  %s1 = inlined_call_operand.hbm [shape: f32[8,16,16], index: 1, kind: output, shape index: {}]
  %s2 = sld [smem:[#allocation0]]
  $region41: #{tpu_custom_call.1} parent=0
    _
  %s4 = ssub.s32 1, %s2
  %s5 = scalar_select 0, %s4, %s2
  $region1: #{tpu_custom_call.1} parent=0
    #allocation4 [shape = 'u8[32768]{0}', space=vmem, size = 0x8000, scoped, tag = 'input window, operand 0']
    #allocation5 [shape = 's32[2]{0}', space=sflag, size = 0x8, scoped, tag = 'scoped memory for tpu_custom_call.1']
    #allocation6 [shape = 's32[2]{0}', space=sflag, size = 0x8, scoped, tag = 'scoped memory for tpu_custom_call.1']
    #allocation7 [shape = 'u8[32768]{0}', space=vmem, size = 0x8000, scoped, tag = 'output window, operand 0']
    %6 = vsyncpa [#allocation5], 0
    %s7 = scalar_lea.sflag [#allocation5], 1
    %8 = vsyncpa %s7, 0
    %9 = vsyncpa [#allocation6], 0
    %s10 = scalar_lea.sflag [#allocation6], 1
    %11 = vsyncpa %s10, 0
    loop: start=0, step=1, limit=6
    $region2: #{tpu_custom_call.1} parent=1 // loop_pre_header
      _
    $region3: #{tpu_custom_call.1} parent=1 // loop_header
      %s13 = sphi 0, %s17
      %p14 = scmp.ge.s32.totalorder %s13, 6
      %s23 = sphi 0, %s25
      %s26 = sphi 0, %s23
      %s27 = sphi 0, %s26
      %s43 = sphi 0, %s27
      %s49 = sphi 0, %s51
      %s52 = sphi 0, %s49
      %s53 = sphi 0, %s52
      %s69 = sphi 0, %s53
    $region4: #{tpu_custom_call.1} parent=1 // loop_header_branch
      %16 = sbr.rel (%p14) target = $region8
    $region5: #{tpu_custom_call.1} parent=1 // loop_body
      %s18 = ssub.s32 %s13, 1
      %s19 = ssub.s32 %s13, 2
      %s20 = sadd.s32 %s13, 1
      %s21 = ssub.s32 %s13, %s20
      %p22 = scmp.eq.s32.totalorder %s21, 0
      %s24 = sadd.s32 %s23, 1
      %s25 = scalar_select %p22, %s23, %s24
      %p28 = pneg %p22
      %p29 = scmp.eq.s32.totalorder %s13, 3
      %p30 = por %p28, %p29
      %p31 = scmp.ne.s32.totalorder %s23, %s26
      %p32 = scmp.eq.s32.totalorder %s13, 0
      %p33 = por %p31, %p32
      %p34 = scmp.ne.s32.totalorder %s23, %s26
      %p35 = scmp.eq.s32.totalorder %s18, 3
      %p36 = por %p34, %p35
      %p37 = scmp.ne.s32.totalorder %s26, %s27
      %p38 = scmp.eq.s32.totalorder %s18, 0
      %p39 = por %p37, %p38
      %p40 = scmp.ne.s32.totalorder %s26, %s27
      %p41 = scmp.eq.s32.totalorder %s19, 3
      %p42 = por %p40, %p41
      %p44 = scmp.ne.s32.totalorder %s27, %s43
      %p45 = scmp.eq.s32.totalorder %s19, 0
      %p46 = por %p44, %p45
      %s47 = ssub.s32 %s13, %s20
      %p48 = scmp.eq.s32.totalorder %s47, 0
      %s50 = sadd.s32 %s49, 1
      %s51 = scalar_select %p48, %s49, %s50
      %p54 = pneg %p48
      %p55 = scmp.eq.s32.totalorder %s13, 3
      %p56 = por %p54, %p55
      %p57 = scmp.ne.s32.totalorder %s49, %s52
      %p58 = scmp.eq.s32.totalorder %s13, 0
      %p59 = por %p57, %p58
      %p60 = scmp.ne.s32.totalorder %s49, %s52
      %p61 = scmp.eq.s32.totalorder %s18, 3
      %p62 = por %p60, %p61
      %p63 = scmp.ne.s32.totalorder %s52, %s53
      %p64 = scmp.eq.s32.totalorder %s18, 0
      %p65 = por %p63, %p64
      %p66 = scmp.ne.s32.totalorder %s52, %s53
      %p67 = scmp.eq.s32.totalorder %s19, 3
      %p68 = por %p66, %p67
      %p70 = scmp.ne.s32.totalorder %s53, %s69
      %p71 = scmp.eq.s32.totalorder %s19, 0
      %p72 = por %p70, %p71
      %p73 = scmp.le.s32.totalorder 1, %s13
      %p74 = scmp.lt.s32.totalorder %s13, 5
      %p75 = pnand %p73, %p74
      %p76 = pneg %p75
      // Predicated region
      $region9: #{tpu_custom_call.1} parent=5 // pred_check
        _
      $region10: #{tpu_custom_call.1} parent=5 // pred_check_branch
        %78 = sbr.rel (%p75) target = $region12
      $region11: #{tpu_custom_call.1} parent=5 // pred_region
        %s79 = ssub.s32 %s13, 1
      $region12: #{tpu_custom_call.1} parent=5 // pred_fallthru
        _
      %p80 = scmp.lt.s32.totalorder %s13, 4
      // Predicated region
      $region13: #{tpu_custom_call.1} parent=5 // pred_check
        %p81 = pneg %p80
      $region14: #{tpu_custom_call.1} parent=5 // pred_check_branch
        %83 = sbr.rel (%p81) target = $region16
      $region15: #{tpu_custom_call.1} parent=5 // pred_region
        // Predicated region
        $region17: #{tpu_custom_call.1} parent=15 // pred_check
          %p84 = pneg %p33
        $region18: #{tpu_custom_call.1} parent=15 // pred_check_branch
          %86 = sbr.rel (%p84) target = $region20
        $region19: #{tpu_custom_call.1} parent=15 // pred_region
          %s87 = sand.u32 %s23, 1
          %s88 = scalar_lea.sflag [#allocation5], %s87
          %s89 = sand.u32 %s23, 1
          %s90 = smul.addr %s89, 32
          %s91 = scalar_lea.vmem [#allocation4], %s90
          %s92 = smul.u32 2, %s13
          %s94 = ssub.s32 512, 512
          %95 = vsyncadd %s88, %s94
          %s96 = smul.addr %s92, 2
          %s97 = smul.addr %s96, 128
          %s98 = scalar_lea.hbm %s0, %s97
          %s99 = sshll.u32 %s91, 4
          %s100 = int_to_ptr.vmem [resolvable:$true] %s99
          %105 = dma.hbm_to_vmem [thread:$0]  %s98, 512, %s100, %s88, 128, 128, 8
        $region20: #{tpu_custom_call.1} parent=15 // pred_fallthru
          _
      $region16: #{tpu_custom_call.1} parent=5 // pred_fallthru
        _
      %p106 = scmp.le.s32.totalorder 1, %s13
      %p107 = scmp.lt.s32.totalorder %s13, 5
      %p108 = pnand %p106, %p107
      %p109 = pneg %p108
      // Predicated region
      $region21: #{tpu_custom_call.1} parent=5 // pred_check
        _
      $region22: #{tpu_custom_call.1} parent=5 // pred_check_branch
        %111 = sbr.rel (%p108) target = $region24
      $region23: #{tpu_custom_call.1} parent=5 // pred_region
        %s112 = ssub.s32 %s13, 1
        %s113 = sand.u32 %s26, 1
        %s114 = scalar_lea.sflag [#allocation5], %s113
        %s115 = sand.u32 %s26, 1
        %s116 = smul.addr %s115, 32
        %s117 = scalar_lea.vmem [#allocation4], %s116
        // Predicated region
        $region25: #{tpu_custom_call.1} parent=23 // pred_check
          %p118 = pneg %p39
        $region26: #{tpu_custom_call.1} parent=23 // pred_check_branch
          %120 = sbr.rel (%p118) target = $region28
        $region27: #{tpu_custom_call.1} parent=23 // pred_region
          %121 = dma.done %s114, 512
        $region28: #{tpu_custom_call.1} parent=23 // pred_fallthru
          _
        %s122 = sand.u32 %s26, 1
        %s123 = scalar_lea.sflag [#allocation5], %s122
        %s124 = sand.u32 %s26, 1
        %s125 = smul.addr %s124, 32
        %s126 = scalar_lea.vmem [#allocation4], %s125
        %p127 = pneg %p39
        %p128 = pneg %p36
        %p129 = pneg %p65
        %p130 = pneg %p62
        %s131 = sand.u32 %s52, 1
        %s132 = scalar_lea.sflag [#allocation6], %s131
        %s133 = sand.u32 %s52, 1
        %s134 = smul.addr %s133, 32
        %s135 = scalar_lea.vmem [#allocation7], %s134
        %s136 = smul.u32 2, %s18
        %s137 = smul.u32 2, %s18
        %vm138 = vcmask 15360
        %139 = vst.msk [vmem:[#allocation2] sm:$0xff] %vm138, 0.0
        %140 = vst.msk [vmem:[#allocation2 + $0x8] sm:$0xff] %vm138, 0.0
        %141 = vst.msk [vmem:[#allocation2 + $0x10] sm:$0xff] %vm138, 0.0
        %142 = vst.msk [vmem:[#allocation2 + $0x18] sm:$0xff] %vm138, 0.0
        %vm143 = vcmask 154768
        %144 = vst.msk [vmem:[#allocation2] sm:$0xff] %vm143, 0.0
        %145 = vst.msk [vmem:[#allocation2 + $0x8] sm:$0xff] %vm143, 0.0
        %146 = vst.msk [vmem:[#allocation2 + $0x10] sm:$0xff] %vm143, 0.0
        %147 = vst.msk [vmem:[#allocation2 + $0x18] sm:$0xff] %vm143, 0.0
        %v148 = vld [vmem:[%s117] sm:$0xff]
        %v149 = vld [vmem:[%s117 + $0x8] sm:$0xff]
        %v150 = vld [vmem:[%s117 + $0x10] sm:$0xff]
        %v151 = vld [vmem:[%s117 + $0x18] sm:$0xff]
        %156 = vrot.lane.b32.xlu0 %v148, 2
        %v157 = vpop.permute.xlu0 %156
        %158 = vrot.lane.b32.xlu0 %v149, 2
        %v159 = vpop.permute.xlu0 %158
        %160 = vrot.lane.b32.xlu0 %v150, 2
        %v161 = vpop.permute.xlu0 %160
        %162 = vrot.lane.b32.xlu0 %v151, 2
        %v163 = vpop.permute.xlu0 %162
        %vm168 = vcmask 146448
        %169 = vst.msk [vmem:[#allocation2] sm:$0xff] %vm168, %v157
        %170 = vst.msk [vmem:[#allocation2 + $0x8] sm:$0xff] %vm168, %v159
        %171 = vst.msk [vmem:[#allocation2 + $0x10] sm:$0xff] %vm168, %v161
        %172 = vst.msk [vmem:[#allocation2 + $0x18] sm:$0xff] %vm168, %v163
        %v173 = vld [vmem:[#allocation2] sm:$0xff]
        %v174 = vld [vmem:[#allocation2 + $0x8] sm:$0xff]
        %v175 = vld [vmem:[#allocation2 + $0x10] sm:$0xff]
        %v176 = vld [vmem:[#allocation2 + $0x18] sm:$0xff]
        %v177 = vmul.f32 %v173, 0.125
        %v178 = vmul.f32 %v174, 0.125
        %v179 = vmul.f32 %v175, 0.125
        %v180 = vmul.f32 %v176, 0.125
        %v181 = vmul.f32 %v173, 0.375
        %v182 = vmul.f32 %v174, 0.375
        %v183 = vmul.f32 %v175, 0.375
        %v184 = vmul.f32 %v176, 0.375
        %189 = vrot.lane.b32.xlu0 %v181, 127
        %v190 = vpop.permute.xlu0 %189
        %191 = vrot.lane.b32.xlu0 %v182, 127
        %v192 = vpop.permute.xlu0 %191
        %193 = vrot.lane.b32.xlu0 %v183, 127
        %v194 = vpop.permute.xlu0 %193
        %195 = vrot.lane.b32.xlu0 %v184, 127
        %v196 = vpop.permute.xlu0 %195
        %v201 = vadd.f32 %v177, %v190
        %v202 = vadd.f32 %v178, %v192
        %v203 = vadd.f32 %v179, %v194
        %v204 = vadd.f32 %v180, %v196
        %205 = vrot.lane.b32.xlu0 %v181, 126
        %v206 = vpop.permute.xlu0 %205
        %207 = vrot.lane.b32.xlu0 %v182, 126
        %v208 = vpop.permute.xlu0 %207
        %209 = vrot.lane.b32.xlu0 %v183, 126
        %v210 = vpop.permute.xlu0 %209
        %211 = vrot.lane.b32.xlu0 %v184, 126
        %v212 = vpop.permute.xlu0 %211
        %v217 = vadd.f32 %v201, %v206
        %v218 = vadd.f32 %v202, %v208
        %v219 = vadd.f32 %v203, %v210
        %v220 = vadd.f32 %v204, %v212
        %225 = vrot.lane.b32.xlu0 %v177, 125
        %v226 = vpop.permute.xlu0 %225
        %227 = vrot.lane.b32.xlu0 %v178, 125
        %v228 = vpop.permute.xlu0 %227
        %229 = vrot.lane.b32.xlu0 %v179, 125
        %v230 = vpop.permute.xlu0 %229
        %231 = vrot.lane.b32.xlu0 %v180, 125
        %v232 = vpop.permute.xlu0 %231
        %v237 = vadd.f32 %v217, %v226
        %v238 = vadd.f32 %v218, %v228
        %v239 = vadd.f32 %v219, %v230
        %v240 = vadd.f32 %v220, %v232
        %vm241 = vcmask 123904
        %242 = vst.msk [vmem:[#allocation3] sm:$0x3] %vm241, 0.0
        %243 = vst.msk [vmem:[#allocation3 + $0x18] sm:$0x3] %vm241, 0.0
        %vm244 = vcmask 122880
        %245 = vst.msk [vmem:[#allocation3 + $0x12] sm:$0x1] %vm244, 0.0
        %246 = vst.msk [vmem:[#allocation3 + $0x2a] sm:$0x1] %vm244, 0.0
        %vm247 = vcmask 130048
        %248 = vst.msk [vmem:[#allocation3 + $0x2] sm:$0xff] %vm247, %v237
        %249 = vst.msk [vmem:[#allocation3 + $0xa] sm:$0xff] %vm247, %v238
        %250 = vst.msk [vmem:[#allocation3 + $0x1a] sm:$0xff] %vm247, %v239
        %251 = vst.msk [vmem:[#allocation3 + $0x22] sm:$0xff] %vm247, %v240
        %v252 = vld [vmem:[#allocation3] sm:$0xff]
        %v253 = vld [vmem:[#allocation3 + $0x8] sm:$0xff]
        %v254 = vld [vmem:[#allocation3 + $0x18] sm:$0xff]
        %v255 = vld [vmem:[#allocation3 + $0x20] sm:$0xff]
        %v256 = vmul.f32 %v252, 0.125
        %v257 = vmul.f32 %v253, 0.125
        %v258 = vmul.f32 %v254, 0.125
        %v259 = vmul.f32 %v255, 0.125
        %v260 = vld [vmem:[#allocation3 + $0x1] sm:$0xff]
        %v261 = vld [vmem:[#allocation3 + $0x9] sm:$0xff]
        %v262 = vld [vmem:[#allocation3 + $0x19] sm:$0xff]
        %v263 = vld [vmem:[#allocation3 + $0x21] sm:$0xff]
        %v264 = vmul.f32 %v260, 0.375
        %v265 = vmul.f32 %v261, 0.375
        %v266 = vmul.f32 %v262, 0.375
        %v267 = vmul.f32 %v263, 0.375
        %v268 = vadd.f32 %v256, %v264
        %v269 = vadd.f32 %v257, %v265
        %v270 = vadd.f32 %v258, %v266
        %v271 = vadd.f32 %v259, %v267
        %v272 = vld [vmem:[#allocation3 + $0x2] sm:$0xff]
        %v273 = vld [vmem:[#allocation3 + $0xa] sm:$0xff]
        %v274 = vld [vmem:[#allocation3 + $0x1a] sm:$0xff]
        %v275 = vld [vmem:[#allocation3 + $0x22] sm:$0xff]
        %v276 = vmul.f32 %v272, 0.375
        %v277 = vmul.f32 %v273, 0.375
        %v278 = vmul.f32 %v274, 0.375
        %v279 = vmul.f32 %v275, 0.375
        %v280 = vadd.f32 %v268, %v276
        %v281 = vadd.f32 %v269, %v277
        %v282 = vadd.f32 %v270, %v278
        %v283 = vadd.f32 %v271, %v279
        %v284 = vld [vmem:[#allocation3 + $0x3] sm:$0xff]
        %v285 = vld [vmem:[#allocation3 + $0xb] sm:$0xff]
        %v286 = vld [vmem:[#allocation3 + $0x1b] sm:$0xff]
        %v287 = vld [vmem:[#allocation3 + $0x23] sm:$0xff]
        %v288 = vmul.f32 %v284, 0.125
        %v289 = vmul.f32 %v285, 0.125
        %v290 = vmul.f32 %v286, 0.125
        %v291 = vmul.f32 %v287, 0.125
        %v292 = vadd.f32 %v280, %v288
        %v293 = vadd.f32 %v281, %v289
        %v294 = vadd.f32 %v282, %v290
        %v295 = vadd.f32 %v283, %v291
        %296 = vst.msk [vmem:[%s135] sm:$0xff] %vm247, %v292
        %297 = vst.msk [vmem:[%s135 + $0x8] sm:$0xff] %vm247, %v293
        %298 = vst.msk [vmem:[%s135 + $0x10] sm:$0xff] %vm247, %v294
        %299 = vst.msk [vmem:[%s135 + $0x18] sm:$0xff] %vm247, %v295
        %s300 = sand.u32 %s52, 1
        %s301 = scalar_lea.sflag [#allocation6], %s300
        %s302 = sand.u32 %s52, 1
        %s303 = smul.addr %s302, 32
        %s304 = scalar_lea.vmem [#allocation7], %s303
        // Predicated region
        $region29: #{tpu_custom_call.1} parent=23 // pred_check
          %p305 = pneg %p62
        $region30: #{tpu_custom_call.1} parent=23 // pred_check_branch
          %307 = sbr.rel (%p305) target = $region32
        $region31: #{tpu_custom_call.1} parent=23 // pred_region
          %s308 = smul.u32 2, %s18
          %s310 = ssub.s32 512, 512
          %311 = vsyncadd %s301, %s310
          %s312 = smul.addr %s308, 2
          %s313 = smul.addr %s312, 128
          %s314 = scalar_lea.hbm %s1, %s313
          %s315 = sshll.u32 %s304, 4
          %s316 = int_to_ptr.vmem [resolvable:$true] %s315
          %321 = dma.vmem_to_hbm [thread:$0]  %s316, 512, %s314, %s301, 128, 128, 8
        $region32: #{tpu_custom_call.1} parent=23 // pred_fallthru
          _
      $region24: #{tpu_custom_call.1} parent=5 // pred_fallthru
        _
      %p322 = scmp.le.s32.totalorder 2, %s13
      // Predicated region
      $region33: #{tpu_custom_call.1} parent=5 // pred_check
        %p323 = pneg %p322
      $region34: #{tpu_custom_call.1} parent=5 // pred_check_branch
        %325 = sbr.rel (%p323) target = $region36
      $region35: #{tpu_custom_call.1} parent=5 // pred_region
        %s326 = ssub.s32 %s13, 2
        // Predicated region
        $region37: #{tpu_custom_call.1} parent=35 // pred_check
          %p327 = pneg %p68
        $region38: #{tpu_custom_call.1} parent=35 // pred_check_branch
          %329 = sbr.rel (%p327) target = $region40
        $region39: #{tpu_custom_call.1} parent=35 // pred_region
          %s330 = sand.u32 %s53, 1
          %s331 = scalar_lea.sflag [#allocation6], %s330
          %s332 = sand.u32 %s53, 1
          %s333 = smul.addr %s332, 32
          %s334 = scalar_lea.vmem [#allocation7], %s333
          %335 = dma.done %s331, 512
        $region40: #{tpu_custom_call.1} parent=35 // pred_fallthru
          _
      $region36: #{tpu_custom_call.1} parent=5 // pred_fallthru
        _
    $region6: #{tpu_custom_call.1} parent=1 // loop_footer
      %s17 = sadd.s32 1, %s13
    $region7: #{tpu_custom_call.1} parent=1 // loop_footer_branch
      %12 = sbr.rel target = $region3
    $region8: #{tpu_custom_call.1} parent=1 // loop_exit
      _
    %336 = vsyncpa [#allocation5], 1
    %s337 = scalar_lea.sflag [#allocation5], 1
    %338 = vsyncpa %s337, 1
    %339 = vsyncpa [#allocation6], 1
    %s340 = scalar_lea.sflag [#allocation6], 1
    %341 = vsyncpa %s340, 1

</llo_original>
